<compile_context>
chip_gen: v5e
topology: v5e:2x2
jax: 0.10.0
libtpu: 0.0.40
codegen_flags: <defaults>
</compile_context>

<pallas_src>
import functools

import jax
import jax.numpy as jnp
from jax.experimental import pallas as pl
from jax.experimental.pallas import tpu as pltpu


# ----------------------------------------------------------------------------
# Per-generation VMEM budget
# ----------------------------------------------------------------------------
def _pick_vmem_limit():
    phys = None
    try:
        info = pltpu.get_tpu_info()
        phys = int(getattr(info, "vmem_capacity_bytes"))
    except Exception:
        phys = None
    if not phys or phys <= 0:
        phys = 128 * 1024 * 1024
    if phys <= 80 * 1024 * 1024:          # v7x-class: 64 MiB physical per TC
        return 44 * 1024 * 1024
    return 100 * 1024 * 1024              # v5e / v6e: 128 MiB physical


_VMEM_LIMIT = _pick_vmem_limit()
_VMEM_SLACK = 8 * 1024 * 1024             # headroom for compiler scratch


def _cparams(semantics):
    return pltpu.CompilerParams(
        dimension_semantics=semantics,
        vmem_limit_bytes=_VMEM_LIMIT,
    )


def _divisor_tiles(dim, pref):
    """Descending tile candidates that divide `dim` (sublane friendly)."""
    if dim <= pref:
        return [dim]
    cands = [t for t in range(pref, 7, -1) if dim % t == 0 and t % 8 == 0]
    return cands or [dim]


# ----------------------------------------------------------------------------
# Fused [LayerNorm + t2i_modulate] -> matmul(s) -> [gelu] -> [gate*y + residual]
# One kernel covers: qkv projection (3 outputs), fc1 (+GELU), attn/cross proj
# and fc2 (+gated residual), and the plain cross-attn q / kv projections.
# ----------------------------------------------------------------------------
def _fused_matmul_kernel(*refs, n_out, ln, gated, eps, activations):
    idx = 0
    x_ref = refs[idx]; idx += 1
    if ln:
        shift_ref, scale_ref = refs[idx], refs[idx + 1]; idx += 2
    wb_refs = refs[idx: idx + 2 * n_out]; idx += 2 * n_out
    if gated:
        gate_ref, res_ref = refs[idx], refs[idx + 1]; idx += 2
    out_refs = refs[idx:]

    if ln:
        x = x_ref[...].astype(jnp.float32)
        mean = jnp.mean(x, axis=-1, keepdims=True)
        var = jnp.mean(jnp.square(x - mean), axis=-1, keepdims=True)
        x = (x - mean) * jax.lax.rsqrt(var + eps)
        x = x * (1.0 + scale_ref[...].astype(jnp.float32)) \
            + shift_ref[...].astype(jnp.float32)
        xin = x.astype(wb_refs[0].dtype)
    else:
        xin = x_ref[...].astype(wb_refs[0].dtype)

    for o in range(n_out):
        w_ref, b_ref = wb_refs[2 * o], wb_refs[2 * o + 1]
        y = jnp.dot(xin, w_ref[...], preferred_element_type=jnp.float32)
        y = y + b_ref[...].astype(jnp.float32)
        if activations[o] == "gelu_tanh":
            y = jax.nn.gelu(y, approximate=True)
        if gated:
            y = res_ref[...].astype(jnp.float32) \
                + gate_ref[...].astype(jnp.float32) * y
        out_refs[o][...] = y.astype(out_refs[o].dtype)


def _call_fused(x, weights, biases, shift, scale, gate, residual,
                activations, out_dtype, eps, tm, tn):
    B, N, K = x.shape
    n_out = len(weights)
    ln = shift is not None
    gated = gate is not None
    Nouts = [int(w.shape[1]) for w in weights]

    if tn is None:
        # Weight-resident: constant weight index_map -> single DMA, stays in VMEM.
        grid = (B, N // tm)
        def xmap(b, i): return (b, i, 0)
        def vecK(b, i): return (b, 0, 0)
        def wmap(b, i): return (0, 0)
        def bmap(b, i): return (0, 0)
        def gmap(b, i): return (b, 0, 0)
        def omap(b, i): return (b, i, 0)
        w_block = lambda nout: (K, nout)
        b_block = lambda nout: (1, nout)
        g_block = lambda nout: (None, 1, nout)
        o_block = lambda nout: (None, tm, nout)
        semantics = ("parallel", "parallel")
    else:
        assert n_out == 1
        nout0 = Nouts[0]
        grid = (B, N // tm, nout0 // tn)
        def xmap(b, i, j): return (b, i, 0)
        def vecK(b, i, j): return (b, 0, 0)
        def wmap(b, i, j): return (0, j)
        def bmap(b, i, j): return (0, j)
        def gmap(b, i, j): return (b, 0, j)
        def omap(b, i, j): return (b, i, j)
        w_block = lambda nout: (K, tn)
        b_block = lambda nout: (1, tn)
        g_block = lambda nout: (None, 1, tn)
        o_block = lambda nout: (None, tm, tn)
        semantics = ("parallel", "parallel", "parallel")

    inputs = [x]
    in_specs = [pl.BlockSpec((None, tm, K), xmap)]
    if ln:
        inputs += [shift, scale]
        in_specs += [pl.BlockSpec((None, 1, K), vecK),
                     pl.BlockSpec((None, 1, K), vecK)]
    for w, b in zip(weights, biases):
        nout = int(w.shape[1])
        inputs += [w, b.reshape(1, -1)]
        in_specs += [pl.BlockSpec(w_block(nout), wmap),
                     pl.BlockSpec(b_block(nout), bmap)]
    if gated:
        inputs += [gate, residual]
        in_specs += [pl.BlockSpec(g_block(Nouts[0]), gmap),
                     pl.BlockSpec(o_block(Nouts[0]), omap)]

    out_shapes = [jax.ShapeDtypeStruct((B, N, n), out_dtype) for n in Nouts]
    out_specs = [pl.BlockSpec(o_block(n), omap) for n in Nouts]

    kernel = functools.partial(
        _fused_matmul_kernel, n_out=n_out, ln=ln, gated=gated, eps=eps,
        activations=tuple(activations))

    if n_out == 1:
        res = pl.pallas_call(
            kernel, out_shape=out_shapes[0], grid=grid,
            in_specs=in_specs, out_specs=out_specs[0],
            compiler_params=_cparams(semantics))(*inputs)
        return (res,)
    res = pl.pallas_call(
        kernel, out_shape=tuple(out_shapes), grid=grid,
        in_specs=in_specs, out_specs=tuple(out_specs),
        compiler_params=_cparams(semantics))(*inputs)
    return tuple(res)


def fused_matmul(x, weights, biases, *, shift=None, scale=None, gate=None,
                 residual=None, activations=None, out_dtype=jnp.bfloat16,
                 eps=1e-6, tm_pref=512, tn_pref=512):
    B, N, K = x.shape
    n_out = len(weights)
    if activations is None:
        activations = [None] * n_out
    gated = gate is not None
    Nouts = [int(w.shape[1]) for w in weights]
    out_isz = jnp.dtype(out_dtype).itemsize
    w_bytes_total = sum(int(w.shape[0]) * int(w.shape[1]) * w.dtype.itemsize
                        for w in weights)

    def fits(tm, w_buf_bytes, out_cols):
        row = K * x.dtype.itemsize + out_cols * out_isz
        if gated:
            row += Nouts[0] * residual.dtype.itemsize
        return 2 * (w_buf_bytes + tm * row) + _VMEM_SLACK <= _VMEM_LIMIT

    # Preferred: weights fully resident in VMEM (no re-streaming across rows).
    for tm in _divisor_tiles(N, tm_pref):
        if fits(tm, w_bytes_total, sum(Nouts)):
            return _call_fused(x, weights, biases, shift, scale, gate, residual,
                               activations, out_dtype, eps, tm, None)

    # Fallback: tile the output-column axis, one output at a time.
    outs = []
    for o in range(n_out):
        w, b = weights[o], biases[o]
        nout = Nouts[o]
        sel = None
        for tn in _divisor_tiles(nout, tn_pref):
            for tm in _divisor_tiles(N, tm_pref):
                if fits(tm, int(w.shape[0]) * tn * w.dtype.itemsize, tn):
                    sel = (tm, tn)
                    break
            if sel is not None:
                break
        if sel is None:
            # TODO(synk): add a K-tiled accumulator path for extreme K; this
            # best-effort choice may exceed the VMEM budget for huge models.
            sel = (_divisor_tiles(N, tm_pref)[-1],
                   _divisor_tiles(nout, tn_pref)[-1])
        outs.append(_call_fused(x, [w], [b], shift, scale, gate, residual,
                                [activations[o]], out_dtype, eps,
                                sel[0], sel[1])[0])
    return tuple(outs)


# ----------------------------------------------------------------------------
# Flash-style self attention, all heads per grid step (lane-dense (tile, C) IO)
# ----------------------------------------------------------------------------
def _mha_self_kernel(q_ref, k_ref, v_ref, o_ref, m_sc, l_sc, acc_sc, *,
                     scale, num_heads):
    ki = pl.program_id(2)

    @pl.when(ki == 0)
    def _():
        m_sc[...] = jnp.full_like(m_sc, -jnp.inf)
        l_sc[...] = jnp.zeros_like(l_sc)
        acc_sc[...] = jnp.zeros_like(acc_sc)

    q = q_ref[...]                                  # (tq, C) bf16
    k = k_ref[...]                                  # (tk, C) bf16
    v = v_ref[...]                                  # (tk, C) bf16
    hd = q.shape[-1] // num_heads

    for h in range(num_heads):
        sl = slice(h * hd, (h + 1) * hd)
        qh = q[:, sl]
        kh = k[:, sl]
        s = jax.lax.dot_general(qh, kh, (((1,), (1,)), ((), ())),
                                preferred_element_type=jnp.float32) * scale
        m_prev = m_sc[:, h:h + 1]
        m_new = jnp.maximum(m_prev, jnp.max(s, axis=-1, keepdims=True))
        alpha = jnp.exp(m_prev - m_new)
        p = jnp.exp(s - m_new)
        l_sc[:, h:h + 1] = alpha * l_sc[:, h:h + 1] \
            + jnp.sum(p, axis=-1, keepdims=True)
        acc_sc[:, sl] = alpha * acc_sc[:, sl] + jnp.dot(
            p.astype(v.dtype), v[:, sl], preferred_element_type=jnp.float32)
        m_sc[:, h:h + 1] = m_new

    @pl.when(ki == pl.num_programs(2) - 1)
    def _():
        for h in range(num_heads):
            sl = slice(h * hd, (h + 1) * hd)
            acc_sc[:, sl] = acc_sc[:, sl] * pl.reciprocal(
                l_sc[:, h:h + 1], approx=True)
        o_ref[...] = acc_sc[...].astype(o_ref.dtype)


def self_attention(q, k, v, *, num_heads, scale, out_dtype=jnp.bfloat16,
                   tq_pref=512, tk_pref=512):
    B, N, C = q.shape
    esz = q.dtype.itemsize
    out_isz = jnp.dtype(out_dtype).itemsize

    def fits(tq, tk):
        vmem = 2 * (tq * C * esz + 2 * tk * C * esz + tq * C * out_isz)
        vmem += tq * C * 4 + 2 * tq * 128 * 4     # acc + (m,l) scratch (padded)
        return vmem + _VMEM_SLACK <= _VMEM_LIMIT

    q_tiles = _divisor_tiles(N, tq_pref)
    k_tiles = _divisor_tiles(N, tk_pref)

    def pick():
        for tq_c in q_tiles:
            for tk_c in k_tiles:
                if fits(tq_c, tk_c):
                    return tq_c, tk_c
        return q_tiles[-1], k_tiles[-1]

    tq, tk = pick()
    grid = (B, N // tq, N // tk)
    return pl.pallas_call(
        functools.partial(_mha_self_kernel, scale=scale, num_heads=num_heads),
        out_shape=jax.ShapeDtypeStruct((B, N, C), out_dtype),
        grid=grid,
        in_specs=[
            pl.BlockSpec((None, tq, C), lambda b, qi, ki: (b, qi, 0)),
            pl.BlockSpec((None, tk, C), lambda b, qi, ki: (b, ki, 0)),
            pl.BlockSpec((None, tk, C), lambda b, qi, ki: (b, ki, 0)),
        ],
        out_specs=pl.BlockSpec((None, tq, C), lambda b, qi, ki: (b, qi, 0)),
        scratch_shapes=[
            pltpu.VMEM((tq, num_heads), jnp.float32),   # running max (per head)
            pltpu.VMEM((tq, num_heads), jnp.float32),   # running denom
            pltpu.VMEM((tq, C), jnp.float32),           # running output acc
        ],
        compiler_params=_cparams(("parallel", "parallel", "arbitrary")),
    )(q, k, v)


# ----------------------------------------------------------------------------
# Cross attention (mask=None): tiny resident KV, single-pass softmax, all heads
# ----------------------------------------------------------------------------
def _cross_attn_kernel(q_ref, kv_ref, o_ref, acc_sc, *, scale, num_heads):
    q = q_ref[...]                                  # (tq, C)
    kv = kv_ref[...]                                # (Lk, 2C), layout [k | v]
    C = q.shape[-1]
    hd = C // num_heads
    for h in range(num_heads):
        sl = slice(h * hd, (h + 1) * hd)
        kh = kv[:, h * hd:(h + 1) * hd]
        vh = kv[:, C + h * hd: C + (h + 1) * hd]
        s = jax.lax.dot_general(q[:, sl], kh, (((1,), (1,)), ((), ())),
                                preferred_element_type=jnp.float32) * scale
        m = jnp.max(s, axis=-1, keepdims=True)
        p = jnp.exp(s - m)
        denom = jnp.sum(p, axis=-1, keepdims=True)
        o = jnp.dot(p.astype(vh.dtype), vh, preferred_element_type=jnp.float32)
        acc_sc[:, sl] = o * pl.reciprocal(denom, approx=True)
    o_ref[...] = acc_sc[...].astype(o_ref.dtype)


def cross_attention(q2d, kv2d, *, num_heads, scale, out_dtype=jnp.bfloat16,
                    tq_pref=1024):
    Lq, C = q2d.shape
    Lk, C2 = kv2d.shape
    esz = q2d.dtype.itemsize
    out_isz = jnp.dtype(out_dtype).itemsize

    def fits(tq):
        vmem = 2 * (tq * C * esz + Lk * C2 * kv2d.dtype.itemsize
                    + tq * C * out_isz) + tq * C * 4
        return vmem + _VMEM_SLACK <= _VMEM_LIMIT

    tiles = _divisor_tiles(Lq, tq_pref)
    tq = tiles[-1]
    for t in tiles:
        if fits(t):
            tq = t
            break

    grid = (Lq // tq,)
    return pl.pallas_call(
        functools.partial(_cross_attn_kernel, scale=scale, num_heads=num_heads),
        out_shape=jax.ShapeDtypeStruct((Lq, C), out_dtype),
        grid=grid,
        in_specs=[
            pl.BlockSpec((tq, C), lambda i: (i, 0)),
            pl.BlockSpec((Lk, C2), lambda i: (0, 0)),     # resident KV
        ],
        out_specs=pl.BlockSpec((tq, C), lambda i: (i, 0)),
        scratch_shapes=[pltpu.VMEM((tq, C), jnp.float32)],
        compiler_params=_cparams(("parallel",)),
    )(q2d, kv2d)


# ----------------------------------------------------------------------------
# TransformerBlock forward (mask=None, drop_path=0, dropout p=0)
# ----------------------------------------------------------------------------
def transformer_block_forward(params, x, y, y_t):
    B, N, C = x.shape
    H = params["num_heads"]
    hd = C // H
    scale = hd ** -0.5
    p = params

    # adaLN-single modulation params (B, 6, C)
    mod = p["scale_shift_table"][None] + y.reshape(B, 6, C)
    shift_msa, scale_msa, gate_msa = mod[:, 0:1], mod[:, 1:2], mod[:, 2:3]
    shift_mlp, scale_mlp, gate_mlp = mod[:, 3:4], mod[:, 4:5], mod[:, 5:6]

    # ---- self attention (WindowAttention, window_size=0, use_rel_pos=False) --
    # Fused LayerNorm + t2i_modulate + q/k/v projections (3 lane-dense outputs;
    # no XLA head transposes anywhere).
    q, k, v = fused_matmul(x, [p["wq"], p["wk"], p["wv"]],
                           [p["bq"], p["bk"], p["bv"]],
                           shift=shift_msa, scale=scale_msa)
    a = self_attention(q, k, v, num_heads=H, scale=scale)          # (B, N, C)
    # attn proj with fused gate_msa * out + residual; residual stream in bf16.
    (x1,) = fused_matmul(a, [p["attn_proj_w"]], [p["attn_proj_b"]],
                         gate=gate_msa, residual=x, out_dtype=jnp.bfloat16)

    # ---- cross attention (mask=None: batch flattened into one sequence) ----
    M = y_t.shape[1]
    (qc,) = fused_matmul(x1.reshape(1, B * N, C), [p["q_w"]], [p["q_b"]])
    (kvc,) = fused_matmul(y_t.reshape(1, B * M, C), [p["kv_w"]], [p["kv_b"]])
    ca = cross_attention(qc.reshape(B * N, C), kvc.reshape(B * M, 2 * C),
                         num_heads=H, scale=scale)                 # (B*N, C)
    ones_gate = jnp.ones((B, 1, C), jnp.float32)
    (x2,) = fused_matmul(ca.reshape(B, N, C), [p["cross_proj_w"]],
                         [p["cross_proj_b"]], gate=ones_gate, residual=x1,
                         out_dtype=jnp.bfloat16)

    # ---- MLP: fused LN+modulate+fc1+GELU(tanh), then fc2 + gate + residual --
    (h,) = fused_matmul(x2, [p["fc1_w"]], [p["fc1_b"]],
                        shift=shift_mlp, scale=scale_mlp,
                        activations=["gelu_tanh"])                 # (B, N, 4C)
    (out,) = fused_matmul(h, [p["fc2_w"]], [p["fc2_b"]],
                          gate=gate_mlp, residual=x2, out_dtype=jnp.float32)
    return out


# ----------------------------------------------------------------------------
# Deterministic parameter construction (weights bf16 for the MXU)
# ----------------------------------------------------------------------------
def make_params(key, hidden_size, num_heads, mlp_ratio=4.0):
    C = hidden_size
    Hmlp = int(C * mlp_ratio)
    ks = jax.random.split(key, 12)

    def lin(kw, fan_in, fan_out):
        w = (jax.random.normal(kw, (fan_in, fan_out), jnp.float32)
             * 0.02).astype(jnp.bfloat16)
        b = jnp.zeros((1, fan_out), jnp.float32)
        return w, b

    wq, bq = lin(ks[0], C, C)
    wk, bk = lin(ks[1], C, C)
    wv, bv = lin(ks[2], C, C)
    attn_pw, attn_pb = lin(ks[3], C, C)
    q_w, q_b = lin(ks[4], C, C)
    kv_w, kv_b = lin(ks[5], C, 2 * C)           # columns ordered [k | v], head-major
    cross_pw, cross_pb = lin(ks[6], C, C)
    fc1_w, fc1_b = lin(ks[7], C, Hmlp)
    fc2_w, fc2_b = lin(ks[8], Hmlp, C)
    sst = jax.random.normal(ks[9], (6, C), jnp.float32) / (C ** 0.5)

    return {
        "num_heads": num_heads,
        "scale_shift_table": sst,
        "wq": wq, "bq": bq, "wk": wk, "bk": bk, "wv": wv, "bv": bv,
        "attn_proj_w": attn_pw, "attn_proj_b": attn_pb,
        "q_w": q_w, "q_b": q_b,
        "kv_w": kv_w, "kv_b": kv_b,
        "cross_proj_w": cross_pw, "cross_proj_b": cross_pb,
        "fc1_w": fc1_w, "fc1_b": fc1_b,
        "fc2_w": fc2_w, "fc2_b": fc2_b,
    }


# ----------------------------------------------------------------------------
if __name__ == "__main__":
    B, N, C = 2, 8, 32          # batch, tokens, hidden_size
    num_heads = 4
    M = 8                       # cross-attention cond tokens

    key = jax.random.PRNGKey(0)
    kx, ky, kyt, kp = jax.random.split(key, 4)

    x = jax.random.normal(kx, (B, N, C), jnp.float32)
    y = jax.random.normal(ky, (B, 6 * C), jnp.float32)      # adaLN conditioning
    y_t = jax.random.normal(kyt, (B, M, C), jnp.float32)    # cross-attn cond

    params = make_params(kp, C, num_heads, mlp_ratio=4.0)

    out = transformer_block_forward(params, x, y, y_t)
    out = jax.block_until_ready(out)
    assert out.shape == (B, N, C)
    assert jnp.all(jnp.isfinite(out))
    print("KERNEL_OK")
</pallas_src>

<mosaic_0001>
module attributes {stable_mosaic.version = 11 : i64} {
  func.func @_fused_matmul_kernel(%arg0: i32, %arg1: i32, %arg2: memref<1x8x32xf32, #tpu.memory_space<vmem>>, %arg3: memref<1x1x32xf32, #tpu.memory_space<vmem>>, %arg4: memref<1x1x32xf32, #tpu.memory_space<vmem>>, %arg5: memref<32x32xbf16, #tpu.memory_space<vmem>>, %arg6: memref<1x32xf32, #tpu.memory_space<vmem>>, %arg7: memref<32x32xbf16, #tpu.memory_space<vmem>>, %arg8: memref<1x32xf32, #tpu.memory_space<vmem>>, %arg9: memref<32x32xbf16, #tpu.memory_space<vmem>>, %arg10: memref<1x32xf32, #tpu.memory_space<vmem>>, %arg11: memref<1x8x32xbf16, #tpu.memory_space<vmem>>, %arg12: memref<1x8x32xbf16, #tpu.memory_space<vmem>>, %arg13: memref<1x8x32xbf16, #tpu.memory_space<vmem>>) attributes {dimension_semantics = [#tpu.dimension_semantics<parallel>, #tpu.dimension_semantics<parallel>], iteration_bounds = array<i64: 2, 1>, scalar_prefetch = 0 : i64, scratch_operands = 0 : i64, tpu.core_type = #tpu.core_type<tc>, window_params = [{transform_indices = @transform_0, window_bounds = array<i64: 1, 8, 32>}, {transform_indices = @transform_1, window_bounds = array<i64: 1, 1, 32>}, {transform_indices = @transform_2, window_bounds = array<i64: 1, 1, 32>}, {pipeline_mode = #tpu.pipeline_mode<synchronous>, transform_indices = @transform_3, window_bounds = array<i64: 32, 32>}, {pipeline_mode = #tpu.pipeline_mode<synchronous>, transform_indices = @transform_4, window_bounds = array<i64: 1, 32>}, {pipeline_mode = #tpu.pipeline_mode<synchronous>, transform_indices = @transform_5, window_bounds = array<i64: 32, 32>}, {pipeline_mode = #tpu.pipeline_mode<synchronous>, transform_indices = @transform_6, window_bounds = array<i64: 1, 32>}, {pipeline_mode = #tpu.pipeline_mode<synchronous>, transform_indices = @transform_7, window_bounds = array<i64: 32, 32>}, {pipeline_mode = #tpu.pipeline_mode<synchronous>, transform_indices = @transform_8, window_bounds = array<i64: 1, 32>}, {transform_indices = @transform_9, window_bounds = array<i64: 1, 8, 32>}, {transform_indices = @transform_10, window_bounds = array<i64: 1, 8, 32>}, {transform_indices = @transform_11, window_bounds = array<i64: 1, 8, 32>}]} {
    %c0 = arith.constant 0 : index
    %c0_0 = arith.constant 0 : index
    %c0_1 = arith.constant 0 : index
    %0 = vector.load %arg2[%c0, %c0_0, %c0_1] : memref<1x8x32xf32, #tpu.memory_space<vmem>>, vector<1x8x32xf32>
    %1 = vector.shape_cast %0 : vector<1x8x32xf32> to vector<8x32xf32>
    %cst = arith.constant dense<0.000000e+00> : vector<8xf32>
    %2 = vector.multi_reduction <add>, %1, %cst [1] : vector<8x32xf32> to vector<8xf32>
    %3 = vector.shape_cast %2 : vector<8xf32> to vector<8x1xf32>
    %cst_2 = arith.constant 3.200000e+01 : f32
    %4 = vector.broadcast %cst_2 : f32 to vector<8x1xf32>
    %5 = arith.divf %3, %4 : vector<8x1xf32>
    %6 = vector.broadcast %5 : vector<8x1xf32> to vector<8x32xf32>
    %7 = arith.subf %1, %6 : vector<8x32xf32>
    %8 = arith.mulf %7, %7 : vector<8x32xf32>
    %cst_3 = arith.constant dense<0.000000e+00> : vector<8xf32>
    %9 = vector.multi_reduction <add>, %8, %cst_3 [1] : vector<8x32xf32> to vector<8xf32>
    %10 = vector.shape_cast %9 : vector<8xf32> to vector<8x1xf32>
    %cst_4 = arith.constant 3.200000e+01 : f32
    %11 = vector.broadcast %cst_4 : f32 to vector<8x1xf32>
    %12 = arith.divf %10, %11 : vector<8x1xf32>
    %13 = vector.broadcast %5 : vector<8x1xf32> to vector<8x32xf32>
    %14 = arith.subf %1, %13 : vector<8x32xf32>
    %cst_5 = arith.constant 9.99999997E-7 : f32
    %15 = vector.broadcast %cst_5 : f32 to vector<8x1xf32>
    %16 = arith.addf %12, %15 : vector<8x1xf32>
    %17 = math.rsqrt %16 : vector<8x1xf32>
    %18 = vector.broadcast %17 : vector<8x1xf32> to vector<8x32xf32>
    %19 = arith.mulf %14, %18 : vector<8x32xf32>
    %c0_6 = arith.constant 0 : index
    %c0_7 = arith.constant 0 : index
    %c0_8 = arith.constant 0 : index
    %20 = vector.load %arg4[%c0_6, %c0_7, %c0_8] : memref<1x1x32xf32, #tpu.memory_space<vmem>>, vector<1x1x32xf32>
    %21 = vector.shape_cast %20 : vector<1x1x32xf32> to vector<1x32xf32>
    %cst_9 = arith.constant 1.000000e+00 : f32
    %22 = vector.broadcast %cst_9 : f32 to vector<1x32xf32>
    %23 = arith.addf %22, %21 : vector<1x32xf32>
    %24 = vector.broadcast %23 : vector<1x32xf32> to vector<8x32xf32>
    %25 = arith.mulf %19, %24 : vector<8x32xf32>
    %c0_10 = arith.constant 0 : index
    %c0_11 = arith.constant 0 : index
    %c0_12 = arith.constant 0 : index
    %26 = vector.load %arg3[%c0_10, %c0_11, %c0_12] : memref<1x1x32xf32, #tpu.memory_space<vmem>>, vector<1x1x32xf32>
    %27 = vector.shape_cast %26 : vector<1x1x32xf32> to vector<1x32xf32>
    %28 = vector.broadcast %27 : vector<1x32xf32> to vector<8x32xf32>
    %29 = arith.addf %25, %28 : vector<8x32xf32>
    %30 = arith.truncf %29 : vector<8x32xf32> to vector<8x32xbf16>
    %c0_13 = arith.constant 0 : index
    %c0_14 = arith.constant 0 : index
    %31 = vector.load %arg5[%c0_13, %c0_14] : memref<32x32xbf16, #tpu.memory_space<vmem>>, vector<32x32xbf16>
    %cst_15 = arith.constant dense<0.000000e+00> : vector<8x32xf32>
    %32 = tpu.matmul %30, %31, %cst_15 {dimension_numbers = #tpu.dot_dimension_numbers<[1], [0], [0], [1], [0, 0, 1, 1], [], []>} : vector<8x32xbf16>, vector<32x32xbf16>, vector<8x32xf32> -> vector<8x32xf32>
    %c0_16 = arith.constant 0 : index
    %c0_17 = arith.constant 0 : index
    %33 = vector.load %arg6[%c0_16, %c0_17] : memref<1x32xf32, #tpu.memory_space<vmem>>, vector<1x32xf32>
    %34 = vector.broadcast %33 : vector<1x32xf32> to vector<8x32xf32>
    %35 = arith.addf %32, %34 : vector<8x32xf32>
    %36 = arith.truncf %35 : vector<8x32xf32> to vector<8x32xbf16>
    %c0_18 = arith.constant 0 : index
    %c0_19 = arith.constant 0 : index
    %c0_20 = arith.constant 0 : index
    %37 = vector.load %arg11[%c0_18, %c0_19, %c0_20] : memref<1x8x32xbf16, #tpu.memory_space<vmem>>, vector<1x8x32xbf16>
    %38 = vector.shape_cast %37 : vector<1x8x32xbf16> to vector<8x32xbf16>
    %39 = vector.shape_cast %36 : vector<8x32xbf16> to vector<1x8x32xbf16>
    tpu.vector_store %arg11[%c0_18, %c0_19, %c0_20], %39 {strides = array<i32>} : memref<1x8x32xbf16, #tpu.memory_space<vmem>>, vector<1x8x32xbf16>,
    %c0_21 = arith.constant 0 : index
    %c0_22 = arith.constant 0 : index
    %40 = vector.load %arg7[%c0_21, %c0_22] : memref<32x32xbf16, #tpu.memory_space<vmem>>, vector<32x32xbf16>
    %cst_23 = arith.constant dense<0.000000e+00> : vector<8x32xf32>
    %41 = tpu.matmul %30, %40, %cst_23 {dimension_numbers = #tpu.dot_dimension_numbers<[1], [0], [0], [1], [0, 0, 1, 1], [], []>} : vector<8x32xbf16>, vector<32x32xbf16>, vector<8x32xf32> -> vector<8x32xf32>
    %c0_24 = arith.constant 0 : index
    %c0_25 = arith.constant 0 : index
    %42 = vector.load %arg8[%c0_24, %c0_25] : memref<1x32xf32, #tpu.memory_space<vmem>>, vector<1x32xf32>
    %43 = vector.broadcast %42 : vector<1x32xf32> to vector<8x32xf32>
    %44 = arith.addf %41, %43 : vector<8x32xf32>
    %45 = arith.truncf %44 : vector<8x32xf32> to vector<8x32xbf16>
    %c0_26 = arith.constant 0 : index
    %c0_27 = arith.constant 0 : index
    %c0_28 = arith.constant 0 : index
    %46 = vector.load %arg12[%c0_26, %c0_27, %c0_28] : memref<1x8x32xbf16, #tpu.memory_space<vmem>>, vector<1x8x32xbf16>
    %47 = vector.shape_cast %46 : vector<1x8x32xbf16> to vector<8x32xbf16>
    %48 = vector.shape_cast %45 : vector<8x32xbf16> to vector<1x8x32xbf16>
    tpu.vector_store %arg12[%c0_26, %c0_27, %c0_28], %48 {strides = array<i32>} : memref<1x8x32xbf16, #tpu.memory_space<vmem>>, vector<1x8x32xbf16>,
    %c0_29 = arith.constant 0 : index
    %c0_30 = arith.constant 0 : index
    %49 = vector.load %arg9[%c0_29, %c0_30] : memref<32x32xbf16, #tpu.memory_space<vmem>>, vector<32x32xbf16>
    %cst_31 = arith.constant dense<0.000000e+00> : vector<8x32xf32>
    %50 = tpu.matmul %30, %49, %cst_31 {dimension_numbers = #tpu.dot_dimension_numbers<[1], [0], [0], [1], [0, 0, 1, 1], [], []>} : vector<8x32xbf16>, vector<32x32xbf16>, vector<8x32xf32> -> vector<8x32xf32>
    %c0_32 = arith.constant 0 : index
    %c0_33 = arith.constant 0 : index
    %51 = vector.load %arg10[%c0_32, %c0_33] : memref<1x32xf32, #tpu.memory_space<vmem>>, vector<1x32xf32>
    %52 = vector.broadcast %51 : vector<1x32xf32> to vector<8x32xf32>
    %53 = arith.addf %50, %52 : vector<8x32xf32>
    %54 = arith.truncf %53 : vector<8x32xf32> to vector<8x32xbf16>
    %c0_34 = arith.constant 0 : index
    %c0_35 = arith.constant 0 : index
    %c0_36 = arith.constant 0 : index
    %55 = vector.load %arg13[%c0_34, %c0_35, %c0_36] : memref<1x8x32xbf16, #tpu.memory_space<vmem>>, vector<1x8x32xbf16>
    %56 = vector.shape_cast %55 : vector<1x8x32xbf16> to vector<8x32xbf16>
    %57 = vector.shape_cast %54 : vector<8x32xbf16> to vector<1x8x32xbf16>
    tpu.vector_store %arg13[%c0_34, %c0_35, %c0_36], %57 {strides = array<i32>} : memref<1x8x32xbf16, #tpu.memory_space<vmem>>, vector<1x8x32xbf16>,
    return
  }
  func.func @transform_0(%arg0: i32, %arg1: i32) -> (i32, i32, i32) {
    %c0_i32 = arith.constant 0 : i32
    %c0_i32_0 = arith.constant 0 : i32
    return %arg0, %arg1, %c0_i32 : i32, i32, i32
  }
  func.func @transform_1(%arg0: i32, %arg1: i32) -> (i32, i32, i32) {
    %c0_i32 = arith.constant 0 : i32
    %c0_i32_0 = arith.constant 0 : i32
    %c0_i32_1 = arith.constant 0 : i32
    return %arg0, %c0_i32, %c0_i32_0 : i32, i32, i32
  }
  func.func @transform_2(%arg0: i32, %arg1: i32) -> (i32, i32, i32) {
    %c0_i32 = arith.constant 0 : i32
    %c0_i32_0 = arith.constant 0 : i32
    %c0_i32_1 = arith.constant 0 : i32
    return %arg0, %c0_i32, %c0_i32_0 : i32, i32, i32
  }
  func.func @transform_3(%arg0: i32, %arg1: i32) -> (i32, i32) {
    %c0_i32 = arith.constant 0 : i32
    %c0_i32_0 = arith.constant 0 : i32
    %c0_i32_1 = arith.constant 0 : i32
    return %c0_i32, %c0_i32_0 : i32, i32
  }
  func.func @transform_4(%arg0: i32, %arg1: i32) -> (i32, i32) {
    %c0_i32 = arith.constant 0 : i32
    %c0_i32_0 = arith.constant 0 : i32
    %c0_i32_1 = arith.constant 0 : i32
    return %c0_i32, %c0_i32_0 : i32, i32
  }
  func.func @transform_5(%arg0: i32, %arg1: i32) -> (i32, i32) {
    %c0_i32 = arith.constant 0 : i32
    %c0_i32_0 = arith.constant 0 : i32
    %c0_i32_1 = arith.constant 0 : i32
    return %c0_i32, %c0_i32_0 : i32, i32
  }
  func.func @transform_6(%arg0: i32, %arg1: i32) -> (i32, i32) {
    %c0_i32 = arith.constant 0 : i32
    %c0_i32_0 = arith.constant 0 : i32
    %c0_i32_1 = arith.constant 0 : i32
    return %c0_i32, %c0_i32_0 : i32, i32
  }
  func.func @transform_7(%arg0: i32, %arg1: i32) -> (i32, i32) {
    %c0_i32 = arith.constant 0 : i32
    %c0_i32_0 = arith.constant 0 : i32
    %c0_i32_1 = arith.constant 0 : i32
    return %c0_i32, %c0_i32_0 : i32, i32
  }
  func.func @transform_8(%arg0: i32, %arg1: i32) -> (i32, i32) {
    %c0_i32 = arith.constant 0 : i32
    %c0_i32_0 = arith.constant 0 : i32
    %c0_i32_1 = arith.constant 0 : i32
    return %c0_i32, %c0_i32_0 : i32, i32
  }
  func.func @transform_9(%arg0: i32, %arg1: i32) -> (i32, i32, i32) {
    %c0_i32 = arith.constant 0 : i32
    %c0_i32_0 = arith.constant 0 : i32
    return %arg0, %arg1, %c0_i32 : i32, i32, i32
  }
  func.func @transform_10(%arg0: i32, %arg1: i32) -> (i32, i32, i32) {
    %c0_i32 = arith.constant 0 : i32
    %c0_i32_0 = arith.constant 0 : i32
    return %arg0, %arg1, %c0_i32 : i32, i32, i32
  }
  func.func @transform_11(%arg0: i32, %arg1: i32) -> (i32, i32, i32) {
    %c0_i32 = arith.constant 0 : i32
    %c0_i32_0 = arith.constant 0 : i32
    return %arg0, %arg1, %c0_i32 : i32, i32, i32
  }
}

</mosaic_0001>

<llo_original>
// kernel: tpu_custom_call.1
$region0: #{tpu_custom_call.1}
  #allocation0 [shape = 'u32[]', space=smem, size = 0x4, offset = 0x4, fixed_abs, tag = 'smem constant byte address 0x4 - core index']
  #allocation1 [shape = 'u32[72,128]{1,0:T(1,128)}', space=vmem, size = 0x9000, scoped, tag = 'internal scratch']
  %s0 = inlined_call_operand.hbm [shape: f32[2,8,32], index: 0, kind: input, shape index: {}]
  %s1 = inlined_call_operand.hbm [shape: f32[2,1,32], index: 1, kind: input, shape index: {}]
  %s2 = inlined_call_operand.hbm [shape: f32[2,1,32], index: 2, kind: input, shape index: {}]
  %s3 = inlined_call_operand.hbm [shape: bf16[32,32], index: 3, kind: input, shape index: {}]
  %s4 = inlined_call_operand.vmem [shape: f32[1,32], index: 4, kind: input, shape index: {}]
  %s5 = inlined_call_operand.hbm [shape: bf16[32,32], index: 5, kind: input, shape index: {}]
  %s6 = inlined_call_operand.vmem [shape: f32[1,32], index: 6, kind: input, shape index: {}]
  %s7 = inlined_call_operand.hbm [shape: bf16[32,32], index: 7, kind: input, shape index: {}]
  %s8 = inlined_call_operand.vmem [shape: f32[1,32], index: 8, kind: input, shape index: {}]
  %s9 = inlined_call_operand.hbm [shape: bf16[2,8,32], index: 9, kind: output, shape index: {0}]
  %s10 = inlined_call_operand.hbm [shape: bf16[2,8,32], index: 10, kind: output, shape index: {1}]
  %s11 = inlined_call_operand.hbm [shape: bf16[2,8,32], index: 11, kind: output, shape index: {2}]
  %12 = xla_tuple %s9, %s10, %s11
  %s13 = sld [smem:[#allocation0]]
  $region109: #{tpu_custom_call.1} parent=0
    _
  %s15 = ssub.s32 1, %s13
  %s16 = scalar_select 0, %s15, %s13
  $region1: #{tpu_custom_call.1} parent=0
    #allocation2 [shape = 'u8[8192]{0}', space=vmem, size = 0x2000, scoped, tag = 'input window, operand 0']
    #allocation3 [shape = 's32[2]{0}', space=sflag, size = 0x8, scoped, tag = 'scoped memory for tpu_custom_call.1']
    #allocation4 [shape = 's32[2]{0}', space=sflag, size = 0x8, scoped, tag = 'scoped memory for tpu_custom_call.1']
    #allocation5 [shape = 'u8[1024]{0}', space=vmem, size = 0x400, scoped, tag = 'input window, operand 1']
    #allocation6 [shape = 's32[2]{0}', space=sflag, size = 0x8, scoped, tag = 'scoped memory for tpu_custom_call.1']
    #allocation7 [shape = 'u8[1024]{0}', space=vmem, size = 0x400, scoped, tag = 'input window, operand 2']
    #allocation8 [shape = 'u8[8192]{0}', space=vmem, size = 0x2000, scoped, tag = 'input window, operand 3, single buffered']
    #allocation9 [shape = 's32[1]{0}', space=sflag, size = 0x4, scoped, tag = 'scoped memory for tpu_custom_call.1']
    #allocation10 [shape = 'u8[8192]{0}', space=vmem, size = 0x2000, scoped, tag = 'input window, operand 5, single buffered']
    #allocation11 [shape = 'u8[8192]{0}', space=vmem, size = 0x2000, scoped, tag = 'input window, operand 7, single buffered']
    #allocation12 [shape = 's32[1]{0}', space=sflag, size = 0x4, scoped, tag = 'scoped memory for tpu_custom_call.1']
    #allocation13 [shape = 'u8[4096]{0}', space=vmem, size = 0x1000, scoped, tag = 'output window, operand 0']
    #allocation14 [shape = 'u8[4096]{0}', space=vmem, size = 0x1000, scoped, tag = 'output window, operand 1']
    #allocation15 [shape = 's32[2]{0}', space=sflag, size = 0x8, scoped, tag = 'scoped memory for tpu_custom_call.1']
    #allocation16 [shape = 'u8[4096]{0}', space=vmem, size = 0x1000, scoped, tag = 'output window, operand 2']
    %17 = vsyncpa [#allocation3], 0
    %s18 = scalar_lea.sflag [#allocation3], 1
    %19 = vsyncpa %s18, 0
    %20 = vsyncpa [#allocation6], 0
    %s21 = scalar_lea.sflag [#allocation6], 1
    %22 = vsyncpa %s21, 0
    %23 = vsyncpa [#allocation9], 0
    %24 = vsyncpa [#allocation12], 0
    %25 = vsyncpa [#allocation4], 0
    %s26 = scalar_lea.sflag [#allocation4], 1
    %27 = vsyncpa %s26, 0
    %28 = vsyncpa [#allocation15], 0
    %s29 = scalar_lea.sflag [#allocation15], 1
    %30 = vsyncpa %s29, 0
    loop: start=0, step=1, limit=4
    $region2: #{tpu_custom_call.1} parent=1 // loop_pre_header
      _
    $region3: #{tpu_custom_call.1} parent=1 // loop_header
      %s32 = sphi 0, %s36
      %p33 = scmp.ge.s32.totalorder %s32, 4
      %s39 = sphi 0, %s51
      %s40 = sphi 0, %s47
      %s41 = sphi 0, %s39
      %s42 = sphi 0, %s40
      %s43 = sphi 0, %s41
      %s44 = sphi 0, %s42
      %s56 = sphi 0, %s58
      %s59 = sphi 0, %s56
      %s60 = sphi 0, %s59
      %s76 = sphi 0, %s60
      %s82 = sphi 0, %s84
      %s85 = sphi 0, %s82
      %s86 = sphi 0, %s85
      %s102 = sphi 0, %s86
      %s108 = sphi 0, %s110
      %s111 = sphi 0, %s108
      %s112 = sphi 0, %s111
      %s128 = sphi 0, %s112
      %s132 = sphi 0, %s132
      %s134 = sphi 0, %s132
      %s135 = sphi 0, %s134
      %s149 = sphi 0, %s135
      %s153 = sphi 0, %s153
      %s155 = sphi 0, %s153
      %s156 = sphi 0, %s155
      %s170 = sphi 0, %s156
      %s174 = sphi 0, %s174
      %s176 = sphi 0, %s174
      %s177 = sphi 0, %s176
      %s191 = sphi 0, %s177
      %s195 = sphi 0, %s195
      %s197 = sphi 0, %s195
      %s198 = sphi 0, %s197
      %s212 = sphi 0, %s198
      %s216 = sphi 0, %s216
      %s218 = sphi 0, %s216
      %s219 = sphi 0, %s218
      %s233 = sphi 0, %s219
      %s237 = sphi 0, %s237
      %s239 = sphi 0, %s237
      %s240 = sphi 0, %s239
      %s254 = sphi 0, %s240
      %s262 = sphi 0, %s264
      %s265 = sphi 0, %s262
      %s266 = sphi 0, %s265
      %s282 = sphi 0, %s266
      %s290 = sphi 0, %s292
      %s293 = sphi 0, %s290
      %s294 = sphi 0, %s293
      %s310 = sphi 0, %s294
      %s318 = sphi 0, %s320
      %s321 = sphi 0, %s318
      %s322 = sphi 0, %s321
      %s338 = sphi 0, %s322
    $region4: #{tpu_custom_call.1} parent=1 // loop_header_branch
      %35 = sbr.rel (%p33) target = $region8
    $region5: #{tpu_custom_call.1} parent=1 // loop_body
      %s37 = ssub.s32 %s32, 1
      %s38 = ssub.s32 %s32, 2
      %s45 = sadd.s32 1, %s40
      %p46 = scmp.ge.s32.totalorder %s45, 1
      %s47 = scalar_select %p46, 0, %s45
      %s48 = sadd.s32 1, %s39
      %s49 = scalar_select %p46, %s48, %s39
      %p50 = scmp.ge.s32.totalorder %s49, 2
      %s51 = scalar_select %p50, 0, %s49
      %s52 = ssub.s32 %s39, %s51
      %s53 = ssub.s32 %s40, %s47
      %s54 = sor.u32 %s52, %s53
      %p55 = scmp.eq.s32.totalorder %s54, 0
      %s57 = sadd.s32 %s56, 1
      %s58 = scalar_select %p55, %s56, %s57
      %p61 = pneg %p55
      %p62 = scmp.eq.s32.totalorder %s32, 1
      %p63 = por %p61, %p62
      %p64 = scmp.ne.s32.totalorder %s56, %s59
      %p65 = scmp.eq.s32.totalorder %s32, 0
      %p66 = por %p64, %p65
      %p67 = scmp.ne.s32.totalorder %s56, %s59
      %p68 = scmp.eq.s32.totalorder %s37, 1
      %p69 = por %p67, %p68
      %p70 = scmp.ne.s32.totalorder %s59, %s60
      %p71 = scmp.eq.s32.totalorder %s37, 0
      %p72 = por %p70, %p71
      %p73 = scmp.ne.s32.totalorder %s59, %s60
      %p74 = scmp.eq.s32.totalorder %s38, 1
      %p75 = por %p73, %p74
      %p77 = scmp.ne.s32.totalorder %s60, %s76
      %p78 = scmp.eq.s32.totalorder %s38, 0
      %p79 = por %p77, %p78
      %s80 = ssub.s32 %s39, %s51
      %p81 = scmp.eq.s32.totalorder %s80, 0
      %s83 = sadd.s32 %s82, 1
      %s84 = scalar_select %p81, %s82, %s83
      %p87 = pneg %p81
      %p88 = scmp.eq.s32.totalorder %s32, 1
      %p89 = por %p87, %p88
      %p90 = scmp.ne.s32.totalorder %s82, %s85
      %p91 = scmp.eq.s32.totalorder %s32, 0
      %p92 = por %p90, %p91
      %p93 = scmp.ne.s32.totalorder %s82, %s85
      %p94 = scmp.eq.s32.totalorder %s37, 1
      %p95 = por %p93, %p94
      %p96 = scmp.ne.s32.totalorder %s85, %s86
      %p97 = scmp.eq.s32.totalorder %s37, 0
      %p98 = por %p96, %p97
      %p99 = scmp.ne.s32.totalorder %s85, %s86
      %p100 = scmp.eq.s32.totalorder %s38, 1
      %p101 = por %p99, %p100
      %p103 = scmp.ne.s32.totalorder %s86, %s102
      %p104 = scmp.eq.s32.totalorder %s38, 0
      %p105 = por %p103, %p104
      %s106 = ssub.s32 %s39, %s51
      %p107 = scmp.eq.s32.totalorder %s106, 0
      %s109 = sadd.s32 %s108, 1
      %s110 = scalar_select %p107, %s108, %s109
      %p113 = pneg %p107
      %p114 = scmp.eq.s32.totalorder %s32, 1
      %p115 = por %p113, %p114
      %p116 = scmp.ne.s32.totalorder %s108, %s111
      %p117 = scmp.eq.s32.totalorder %s32, 0
      %p118 = por %p116, %p117
      %p119 = scmp.ne.s32.totalorder %s108, %s111
      %p120 = scmp.eq.s32.totalorder %s37, 1
      %p121 = por %p119, %p120
      %p122 = scmp.ne.s32.totalorder %s111, %s112
      %p123 = scmp.eq.s32.totalorder %s37, 0
      %p124 = por %p122, %p123
      %p125 = scmp.ne.s32.totalorder %s111, %s112
      %p126 = scmp.eq.s32.totalorder %s38, 1
      %p127 = por %p125, %p126
      %p129 = scmp.ne.s32.totalorder %s112, %s128
      %p130 = scmp.eq.s32.totalorder %s38, 0
      %p131 = por %p129, %p130
      %s133 = sadd.s32 %s132, 1
      %p136 = scmp.eq.s32.totalorder %s32, 1
      %p137 = scmp.ne.s32.totalorder %s132, %s134
      %p138 = scmp.eq.s32.totalorder %s32, 0
      %p139 = por %p137, %p138
      %p140 = scmp.ne.s32.totalorder %s132, %s134
      %p141 = scmp.eq.s32.totalorder %s37, 1
      %p142 = por %p140, %p141
      %p143 = scmp.ne.s32.totalorder %s134, %s135
      %p144 = scmp.eq.s32.totalorder %s37, 0
      %p145 = por %p143, %p144
      %p146 = scmp.ne.s32.totalorder %s134, %s135
      %p147 = scmp.eq.s32.totalorder %s38, 1
      %p148 = por %p146, %p147
      %p150 = scmp.ne.s32.totalorder %s135, %s149
      %p151 = scmp.eq.s32.totalorder %s38, 0
      %p152 = por %p150, %p151
      %s154 = sadd.s32 %s153, 1
      %p157 = scmp.eq.s32.totalorder %s32, 1
      %p158 = scmp.ne.s32.totalorder %s153, %s155
      %p159 = scmp.eq.s32.totalorder %s32, 0
      %p160 = por %p158, %p159
      %p161 = scmp.ne.s32.totalorder %s153, %s155
      %p162 = scmp.eq.s32.totalorder %s37, 1
      %p163 = por %p161, %p162
      %p164 = scmp.ne.s32.totalorder %s155, %s156
      %p165 = scmp.eq.s32.totalorder %s37, 0
      %p166 = por %p164, %p165
      %p167 = scmp.ne.s32.totalorder %s155, %s156
      %p168 = scmp.eq.s32.totalorder %s38, 1
      %p169 = por %p167, %p168
      %p171 = scmp.ne.s32.totalorder %s156, %s170
      %p172 = scmp.eq.s32.totalorder %s38, 0
      %p173 = por %p171, %p172
      %s175 = sadd.s32 %s174, 1
      %p178 = scmp.eq.s32.totalorder %s32, 1
      %p179 = scmp.ne.s32.totalorder %s174, %s176
      %p180 = scmp.eq.s32.totalorder %s32, 0
      %p181 = por %p179, %p180
      %p182 = scmp.ne.s32.totalorder %s174, %s176
      %p183 = scmp.eq.s32.totalorder %s37, 1
      %p184 = por %p182, %p183
      %p185 = scmp.ne.s32.totalorder %s176, %s177
      %p186 = scmp.eq.s32.totalorder %s37, 0
      %p187 = por %p185, %p186
      %p188 = scmp.ne.s32.totalorder %s176, %s177
      %p189 = scmp.eq.s32.totalorder %s38, 1
      %p190 = por %p188, %p189
      %p192 = scmp.ne.s32.totalorder %s177, %s191
      %p193 = scmp.eq.s32.totalorder %s38, 0
      %p194 = por %p192, %p193
      %s196 = sadd.s32 %s195, 1
      %p199 = scmp.eq.s32.totalorder %s32, 1
      %p200 = scmp.ne.s32.totalorder %s195, %s197
      %p201 = scmp.eq.s32.totalorder %s32, 0
      %p202 = por %p200, %p201
      %p203 = scmp.ne.s32.totalorder %s195, %s197
      %p204 = scmp.eq.s32.totalorder %s37, 1
      %p205 = por %p203, %p204
      %p206 = scmp.ne.s32.totalorder %s197, %s198
      %p207 = scmp.eq.s32.totalorder %s37, 0
      %p208 = por %p206, %p207
      %p209 = scmp.ne.s32.totalorder %s197, %s198
      %p210 = scmp.eq.s32.totalorder %s38, 1
      %p211 = por %p209, %p210
      %p213 = scmp.ne.s32.totalorder %s198, %s212
      %p214 = scmp.eq.s32.totalorder %s38, 0
      %p215 = por %p213, %p214
      %s217 = sadd.s32 %s216, 1
      %p220 = scmp.eq.s32.totalorder %s32, 1
      %p221 = scmp.ne.s32.totalorder %s216, %s218
      %p222 = scmp.eq.s32.totalorder %s32, 0
      %p223 = por %p221, %p222
      %p224 = scmp.ne.s32.totalorder %s216, %s218
      %p225 = scmp.eq.s32.totalorder %s37, 1
      %p226 = por %p224, %p225
      %p227 = scmp.ne.s32.totalorder %s218, %s219
      %p228 = scmp.eq.s32.totalorder %s37, 0
      %p229 = por %p227, %p228
      %p230 = scmp.ne.s32.totalorder %s218, %s219
      %p231 = scmp.eq.s32.totalorder %s38, 1
      %p232 = por %p230, %p231
      %p234 = scmp.ne.s32.totalorder %s219, %s233
      %p235 = scmp.eq.s32.totalorder %s38, 0
      %p236 = por %p234, %p235
      %s238 = sadd.s32 %s237, 1
      %p241 = scmp.eq.s32.totalorder %s32, 1
      %p242 = scmp.ne.s32.totalorder %s237, %s239
      %p243 = scmp.eq.s32.totalorder %s32, 0
      %p244 = por %p242, %p243
      %p245 = scmp.ne.s32.totalorder %s237, %s239
      %p246 = scmp.eq.s32.totalorder %s37, 1
      %p247 = por %p245, %p246
      %p248 = scmp.ne.s32.totalorder %s239, %s240
      %p249 = scmp.eq.s32.totalorder %s37, 0
      %p250 = por %p248, %p249
      %p251 = scmp.ne.s32.totalorder %s239, %s240
      %p252 = scmp.eq.s32.totalorder %s38, 1
      %p253 = por %p251, %p252
      %p255 = scmp.ne.s32.totalorder %s240, %s254
      %p256 = scmp.eq.s32.totalorder %s38, 0
      %p257 = por %p255, %p256
      %s258 = ssub.s32 %s39, %s51
      %s259 = ssub.s32 %s40, %s47
      %s260 = sor.u32 %s258, %s259
      %p261 = scmp.eq.s32.totalorder %s260, 0
      %s263 = sadd.s32 %s262, 1
      %s264 = scalar_select %p261, %s262, %s263
      %p267 = pneg %p261
      %p268 = scmp.eq.s32.totalorder %s32, 1
      %p269 = por %p267, %p268
      %p270 = scmp.ne.s32.totalorder %s262, %s265
      %p271 = scmp.eq.s32.totalorder %s32, 0
      %p272 = por %p270, %p271
      %p273 = scmp.ne.s32.totalorder %s262, %s265
      %p274 = scmp.eq.s32.totalorder %s37, 1
      %p275 = por %p273, %p274
      %p276 = scmp.ne.s32.totalorder %s265, %s266
      %p277 = scmp.eq.s32.totalorder %s37, 0
      %p278 = por %p276, %p277
      %p279 = scmp.ne.s32.totalorder %s265, %s266
      %p280 = scmp.eq.s32.totalorder %s38, 1
      %p281 = por %p279, %p280
      %p283 = scmp.ne.s32.totalorder %s266, %s282
      %p284 = scmp.eq.s32.totalorder %s38, 0
      %p285 = por %p283, %p284
      %s286 = ssub.s32 %s39, %s51
      %s287 = ssub.s32 %s40, %s47
      %s288 = sor.u32 %s286, %s287
      %p289 = scmp.eq.s32.totalorder %s288, 0
      %s291 = sadd.s32 %s290, 1
      %s292 = scalar_select %p289, %s290, %s291
      %p295 = pneg %p289
      %p296 = scmp.eq.s32.totalorder %s32, 1
      %p297 = por %p295, %p296
      %p298 = scmp.ne.s32.totalorder %s290, %s293
      %p299 = scmp.eq.s32.totalorder %s32, 0
      %p300 = por %p298, %p299
      %p301 = scmp.ne.s32.totalorder %s290, %s293
      %p302 = scmp.eq.s32.totalorder %s37, 1
      %p303 = por %p301, %p302
      %p304 = scmp.ne.s32.totalorder %s293, %s294
      %p305 = scmp.eq.s32.totalorder %s37, 0
      %p306 = por %p304, %p305
      %p307 = scmp.ne.s32.totalorder %s293, %s294
      %p308 = scmp.eq.s32.totalorder %s38, 1
      %p309 = por %p307, %p308
      %p311 = scmp.ne.s32.totalorder %s294, %s310
      %p312 = scmp.eq.s32.totalorder %s38, 0
      %p313 = por %p311, %p312
      %s314 = ssub.s32 %s39, %s51
      %s315 = ssub.s32 %s40, %s47
      %s316 = sor.u32 %s314, %s315
      %p317 = scmp.eq.s32.totalorder %s316, 0
      %s319 = sadd.s32 %s318, 1
      %s320 = scalar_select %p317, %s318, %s319
      %p323 = pneg %p317
      %p324 = scmp.eq.s32.totalorder %s32, 1
      %p325 = por %p323, %p324
      %p326 = scmp.ne.s32.totalorder %s318, %s321
      %p327 = scmp.eq.s32.totalorder %s32, 0
      %p328 = por %p326, %p327
      %p329 = scmp.ne.s32.totalorder %s318, %s321
      %p330 = scmp.eq.s32.totalorder %s37, 1
      %p331 = por %p329, %p330
      %p332 = scmp.ne.s32.totalorder %s321, %s322
      %p333 = scmp.eq.s32.totalorder %s37, 0
      %p334 = por %p332, %p333
      %p335 = scmp.ne.s32.totalorder %s321, %s322
      %p336 = scmp.eq.s32.totalorder %s38, 1
      %p337 = por %p335, %p336
      %p339 = scmp.ne.s32.totalorder %s322, %s338
      %p340 = scmp.eq.s32.totalorder %s38, 0
      %p341 = por %p339, %p340
      %p342 = scmp.le.s32.totalorder 1, %s32
      %p343 = scmp.lt.s32.totalorder %s32, 3
      %p344 = pnand %p342, %p343
      %p345 = pneg %p344
      // Predicated region
      $region9: #{tpu_custom_call.1} parent=5 // pred_check
        _
      $region10: #{tpu_custom_call.1} parent=5 // pred_check_branch
        %347 = sbr.rel (%p344) target = $region12
      $region11: #{tpu_custom_call.1} parent=5 // pred_region
        %s348 = ssub.s32 %s32, 1
        // Predicated region
        $region13: #{tpu_custom_call.1} parent=11 // pred_check
          %p349 = pneg %p145
        $region14: #{tpu_custom_call.1} parent=11 // pred_check_branch
          %351 = sbr.rel (%p349) target = $region16
        $region15: #{tpu_custom_call.1} parent=11 // pred_region
          %353 = vsyncadd [#allocation9], 0
          %s354 = sshll.u32 %s3, 4
          %s355 = int_to_ptr.hbm [resolvable:$true] %s354
          %s356 = sshll.u32 [#allocation8], 4
          %s357 = int_to_ptr.vmem [resolvable:$true] %s356
          %362 = dma.hbm_to_vmem [thread:$0]  %s355, 256, %s357, [#allocation9], 64, 64, 4
        $region16: #{tpu_custom_call.1} parent=11 // pred_fallthru
          _
        // Predicated region
        $region17: #{tpu_custom_call.1} parent=11 // pred_check
          %p363 = pneg %p166
        $region18: #{tpu_custom_call.1} parent=11 // pred_check_branch
          %365 = sbr.rel (%p363) target = $region20
        $region19: #{tpu_custom_call.1} parent=11 // pred_region
          _
        $region20: #{tpu_custom_call.1} parent=11 // pred_fallthru
          _
        // Predicated region
        $region21: #{tpu_custom_call.1} parent=11 // pred_check
          %p366 = pneg %p187
        $region22: #{tpu_custom_call.1} parent=11 // pred_check_branch
          %368 = sbr.rel (%p366) target = $region24
        $region23: #{tpu_custom_call.1} parent=11 // pred_region
          %370 = vsyncadd [#allocation9], 0
          %s371 = sshll.u32 %s5, 4
          %s372 = int_to_ptr.hbm [resolvable:$true] %s371
          %s373 = sshll.u32 [#allocation10], 4
          %s374 = int_to_ptr.vmem [resolvable:$true] %s373
          %379 = dma.hbm_to_vmem [thread:$0]  %s372, 256, %s374, [#allocation9], 64, 64, 4
        $region24: #{tpu_custom_call.1} parent=11 // pred_fallthru
          _
        // Predicated region
        $region25: #{tpu_custom_call.1} parent=11 // pred_check
          %p380 = pneg %p208
        $region26: #{tpu_custom_call.1} parent=11 // pred_check_branch
          %382 = sbr.rel (%p380) target = $region28
        $region27: #{tpu_custom_call.1} parent=11 // pred_region
          _
        $region28: #{tpu_custom_call.1} parent=11 // pred_fallthru
          _
        // Predicated region
        $region29: #{tpu_custom_call.1} parent=11 // pred_check
          %p383 = pneg %p229
        $region30: #{tpu_custom_call.1} parent=11 // pred_check_branch
          %385 = sbr.rel (%p383) target = $region32
        $region31: #{tpu_custom_call.1} parent=11 // pred_region
          %387 = vsyncadd [#allocation12], 0
          %s388 = sshll.u32 %s7, 4
          %s389 = int_to_ptr.hbm [resolvable:$true] %s388
          %s390 = sshll.u32 [#allocation11], 4
          %s391 = int_to_ptr.vmem [resolvable:$true] %s390
          %396 = dma.hbm_to_vmem [thread:$0]  %s389, 256, %s391, [#allocation12], 64, 64, 4
        $region32: #{tpu_custom_call.1} parent=11 // pred_fallthru
          _
        // Predicated region
        $region33: #{tpu_custom_call.1} parent=11 // pred_check
          %p397 = pneg %p250
        $region34: #{tpu_custom_call.1} parent=11 // pred_check_branch
          %399 = sbr.rel (%p397) target = $region36
        $region35: #{tpu_custom_call.1} parent=11 // pred_region
          _
        $region36: #{tpu_custom_call.1} parent=11 // pred_fallthru
          _
      $region12: #{tpu_custom_call.1} parent=5 // pred_fallthru
        _
      %p400 = scmp.lt.s32.totalorder %s32, 2
      // Predicated region
      $region37: #{tpu_custom_call.1} parent=5 // pred_check
        %p401 = pneg %p400
      $region38: #{tpu_custom_call.1} parent=5 // pred_check_branch
        %403 = sbr.rel (%p401) target = $region40
      $region39: #{tpu_custom_call.1} parent=5 // pred_region
        // Predicated region
        $region41: #{tpu_custom_call.1} parent=39 // pred_check
          %p404 = pneg %p66
        $region42: #{tpu_custom_call.1} parent=39 // pred_check_branch
          %406 = sbr.rel (%p404) target = $region44
        $region43: #{tpu_custom_call.1} parent=39 // pred_region
          %s407 = sand.u32 %s56, 1
          %s408 = scalar_lea.sflag [#allocation3], %s407
          %s409 = sand.u32 %s56, 1
          %s410 = smul.addr %s409, 8
          %s411 = scalar_lea.vmem [#allocation2], %s410
          %413 = vsyncadd %s408, 0
          %s414 = sadd.s32 %s40, %s39
          %s415 = smul.addr %s414, 8
          %s416 = scalar_lea.hbm %s0, %s415
          %s418 = sshll.u32 %s416, 4
          %s419 = int_to_ptr.hbm [resolvable:$true] %s418
          %s420 = sshll.u32 %s411, 4
          %s421 = int_to_ptr.vmem [resolvable:$true] %s420
          %423 = dma.hbm_to_vmem [thread:$0]  %s419, 128, %s421, %s408
        $region44: #{tpu_custom_call.1} parent=39 // pred_fallthru
          _
        // Predicated region
        $region45: #{tpu_custom_call.1} parent=39 // pred_check
          %p424 = pneg %p92
        $region46: #{tpu_custom_call.1} parent=39 // pred_check_branch
          %426 = sbr.rel (%p424) target = $region48
        $region47: #{tpu_custom_call.1} parent=39 // pred_region
          %s427 = sand.u32 %s32, 1
          %s428 = scalar_lea.sflag [#allocation6], %s427
          %s429 = sand.u32 %s82, 1
          %s430 = scalar_lea.vmem [#allocation5], %s429
          %432 = vsyncadd %s428, 0
          %s433 = scalar_lea.hbm %s1, %s39
          %s435 = sshll.u32 %s433, 4
          %s436 = int_to_ptr.hbm [resolvable:$true] %s435
          %s437 = sshll.u32 %s430, 4
          %s438 = int_to_ptr.vmem [resolvable:$true] %s437
          %440 = dma.hbm_to_vmem [thread:$0]  %s436, 16, %s438, %s428
        $region48: #{tpu_custom_call.1} parent=39 // pred_fallthru
          _
        // Predicated region
        $region49: #{tpu_custom_call.1} parent=39 // pred_check
          %p441 = pneg %p118
        $region50: #{tpu_custom_call.1} parent=39 // pred_check_branch
          %443 = sbr.rel (%p441) target = $region52
        $region51: #{tpu_custom_call.1} parent=39 // pred_region
          %s444 = sand.u32 %s32, 1
          %s445 = scalar_lea.sflag [#allocation6], %s444
          %s446 = sand.u32 %s108, 1
          %s447 = scalar_lea.vmem [#allocation7], %s446
          %449 = vsyncadd %s445, 0
          %s450 = scalar_lea.hbm %s2, %s39
          %s452 = sshll.u32 %s450, 4
          %s453 = int_to_ptr.hbm [resolvable:$true] %s452
          %s454 = sshll.u32 %s447, 4
          %s455 = int_to_ptr.vmem [resolvable:$true] %s454
          %457 = dma.hbm_to_vmem [thread:$0]  %s453, 16, %s455, %s445
        $region52: #{tpu_custom_call.1} parent=39 // pred_fallthru
          _
      $region40: #{tpu_custom_call.1} parent=5 // pred_fallthru
        _
      %p458 = scmp.le.s32.totalorder 1, %s32
      %p459 = scmp.lt.s32.totalorder %s32, 3
      %p460 = pnand %p458, %p459
      %p461 = pneg %p460
      // Predicated region
      $region53: #{tpu_custom_call.1} parent=5 // pred_check
        _
      $region54: #{tpu_custom_call.1} parent=5 // pred_check_branch
        %463 = sbr.rel (%p460) target = $region56
      $region55: #{tpu_custom_call.1} parent=5 // pred_region
        %s464 = ssub.s32 %s32, 1
        %s465 = sand.u32 %s59, 1
        %s466 = scalar_lea.sflag [#allocation3], %s465
        %s467 = sand.u32 %s59, 1
        %s468 = smul.addr %s467, 8
        %s469 = scalar_lea.vmem [#allocation2], %s468
        // Predicated region
        $region57: #{tpu_custom_call.1} parent=55 // pred_check
          %p470 = pneg %p72
        $region58: #{tpu_custom_call.1} parent=55 // pred_check_branch
          %472 = sbr.rel (%p470) target = $region60
        $region59: #{tpu_custom_call.1} parent=55 // pred_region
          %474 = dma.done %s466, 128
        $region60: #{tpu_custom_call.1} parent=55 // pred_fallthru
          _
        %s475 = sand.u32 %s37, 1
        %s476 = scalar_lea.sflag [#allocation6], %s475
        %s477 = sand.u32 %s85, 1
        %s478 = scalar_lea.vmem [#allocation5], %s477
        // Predicated region
        $region61: #{tpu_custom_call.1} parent=55 // pred_check
          %p479 = pneg %p98
        $region62: #{tpu_custom_call.1} parent=55 // pred_check_branch
          %481 = sbr.rel (%p479) target = $region64
        $region63: #{tpu_custom_call.1} parent=55 // pred_region
          %483 = dma.done %s476, 16
        $region64: #{tpu_custom_call.1} parent=55 // pred_fallthru
          _
        %s484 = sand.u32 %s37, 1
        %s485 = scalar_lea.sflag [#allocation6], %s484
        %s486 = sand.u32 %s111, 1
        %s487 = scalar_lea.vmem [#allocation7], %s486
        // Predicated region
        $region65: #{tpu_custom_call.1} parent=55 // pred_check
          %p488 = pneg %p124
        $region66: #{tpu_custom_call.1} parent=55 // pred_check_branch
          %490 = sbr.rel (%p488) target = $region68
        $region67: #{tpu_custom_call.1} parent=55 // pred_region
          %492 = dma.done %s485, 16
        $region68: #{tpu_custom_call.1} parent=55 // pred_fallthru
          _
        // Predicated region
        $region69: #{tpu_custom_call.1} parent=55 // pred_check
          %p493 = pneg %p145
        $region70: #{tpu_custom_call.1} parent=55 // pred_check_branch
          %495 = sbr.rel (%p493) target = $region72
        $region71: #{tpu_custom_call.1} parent=55 // pred_region
          %497 = dma.done [#allocation9], 256
        $region72: #{tpu_custom_call.1} parent=55 // pred_fallthru
          _
        // Predicated region
        $region73: #{tpu_custom_call.1} parent=55 // pred_check
          %p498 = pneg %p187
        $region74: #{tpu_custom_call.1} parent=55 // pred_check_branch
          %500 = sbr.rel (%p498) target = $region76
        $region75: #{tpu_custom_call.1} parent=55 // pred_region
          %502 = dma.done [#allocation9], 256
        $region76: #{tpu_custom_call.1} parent=55 // pred_fallthru
          _
        // Predicated region
        $region77: #{tpu_custom_call.1} parent=55 // pred_check
          %p503 = pneg %p229
        $region78: #{tpu_custom_call.1} parent=55 // pred_check_branch
          %505 = sbr.rel (%p503) target = $region80
        $region79: #{tpu_custom_call.1} parent=55 // pred_region
          %507 = dma.done [#allocation12], 256
        $region80: #{tpu_custom_call.1} parent=55 // pred_fallthru
          _
        %s508 = sand.u32 %s59, 1
        %s509 = scalar_lea.sflag [#allocation3], %s508
        %s510 = sand.u32 %s59, 1
        %s511 = smul.addr %s510, 8
        %s512 = scalar_lea.vmem [#allocation2], %s511
        %p513 = pneg %p72
        %p514 = pneg %p69
        %s515 = sand.u32 %s37, 1
        %s516 = scalar_lea.sflag [#allocation6], %s515
        %s517 = sand.u32 %s85, 1
        %s518 = scalar_lea.vmem [#allocation5], %s517
        %p519 = pneg %p98
        %p520 = pneg %p95
        %s521 = sand.u32 %s37, 1
        %s522 = scalar_lea.sflag [#allocation6], %s521
        %s523 = sand.u32 %s111, 1
        %s524 = scalar_lea.vmem [#allocation7], %s523
        %p525 = pneg %p124
        %p526 = pneg %p121
        %p527 = pneg %p145
        %p528 = pneg %p142
        %p529 = pneg %p166
        %p530 = pneg %p163
        %p531 = pneg %p187
        %p532 = pneg %p184
        %p533 = pneg %p208
        %p534 = pneg %p205
        %p535 = pneg %p229
        %p536 = pneg %p226
        %p537 = pneg %p250
        %p538 = pneg %p247
        %p539 = pneg %p278
        %p540 = pneg %p275
        %s541 = sand.u32 %s265, 1
        %s542 = scalar_lea.sflag [#allocation4], %s541
        %s543 = sand.u32 %s265, 1
        %s544 = smul.addr %s543, 4
        %s545 = scalar_lea.vmem [#allocation13], %s544
        %p546 = pneg %p306
        %p547 = pneg %p303
        %s548 = sand.u32 %s37, 1
        %s549 = scalar_lea.sflag [#allocation15], %s548
        %s550 = sand.u32 %s293, 1
        %s551 = smul.addr %s550, 4
        %s552 = scalar_lea.vmem [#allocation14], %s551
        %p553 = pneg %p334
        %p554 = pneg %p331
        %s555 = sand.u32 %s37, 1
        %s556 = scalar_lea.sflag [#allocation15], %s555
        %s557 = sand.u32 %s321, 1
        %s558 = smul.addr %s557, 4
        %s559 = scalar_lea.vmem [#allocation16], %s558
        %v561 = vld [vmem:[%s469] sm:$0xff]
        %vm562 = vcmask 261120
        %v563 = vsel %vm562, %v561, 0.0
        %564 = vadd.xlane.f32.xlu0 %v563
        %v565 = vpop.xlane.xlu0 %564
        %v566 = vrcp.pop 32.0
        %v567 = vmul.f32 32.0, %v566
        %v568 = vsub.f32 1.0, %v567
        %v569 = vmul.f32 %v566, %v568
        %v570 = vadd.f32 %v566, %v569
        %vm571 = vweird.f32 %v566
        %v572 = vsel %vm571, %v566, %v570
        %v573 = vmul.f32 %v565, %v572
        %v574 = vsub.f32 %v561, %v573
        %v575 = vmul.f32 %v574, %v574
        %v576 = vsel %vm562, %v575, 0.0
        %577 = vadd.xlane.f32.xlu0 %v576
        %v578 = vpop.xlane.xlu0 %577
        %v579 = vmul.f32 %v578, %v572
        %v580 = vadd.f32 %v579, 1e-06
        %v581 = vrsqrt.pop %v580
        %v582 = vmul.f32 %v581, %v580
        %v583 = vmul.f32 %v582, %v581
        %v584 = vmul.f32 0.5, %v583
        %v585 = vsub.f32 1.5, %v584
        %v586 = vmul.f32 %v581, %v585
        %vm587 = vweird.f32 %v580
        %vm588 = vweird.f32 %v581
        %vm589 = vmor %vm587, %vm588
        %v590 = vsel %vm589, %v581, %v586
        %v591 = vmul.f32 %v574, %v590
        %v592 = vld [vmem:[%s487] sm:$0x1]
        %v593 = vadd.f32 %v592, 1.0
        %v595 = vperm.slane %v593, 0
        %v597 = vmul.f32 %v591, %v595
        %v598 = vld [vmem:[%s478] sm:$0x1]
        %v600 = vperm.slane %v598, 0
        %v602 = vadd.f32 %v597, %v600
        %v603 = vpack.c.bf16 %v602, %v602
        %v604 = vld [vmem:[#allocation8] sm:$0xf]
        %v605 = vld [vmem:[#allocation8 + $0x4] sm:$0xf]
        %v606 = vld [vmem:[#allocation8 + $0x8] sm:$0xf]
        %v607 = vld [vmem:[#allocation8 + $0xc] sm:$0xf]
        %v608 = vld [vmem:[%s4] sm:$0x1]
        %v610 = vperm.slane %v608, 0
        %v616 = vunpack.c.l.b16 %v604
        %v617 = vunpack.c.l.b16 %v605
        %v618 = vunpack.c.l.b16 %v606
        %v619 = vunpack.c.l.b16 %v607
        %v620 = vpack.c.b16 %v617, %v616
        %v621 = vpack.c.b16 %v619, %v618
        %v625 = vsel %vm562, %v603, 0
        %627 = vmatpush.bf16.msra.mxu0 0
        %628 = vmatpush.bf16.msra.mxu0 0
        %629 = vmatpush.bf16.msra.mxu0 0
        %630 = vmatpush.bf16.msra.mxu0 0
        %631 = vmatpush.bf16.msra.mxu0 0
        %632 = vmatpush.bf16.msra.mxu0 0
        %633 = vmatpush.bf16.msra.mxu0 %v621
        %634 = vmatpush.bf16.msra.mxu0 %v620
        %635 = vmatmul.bf16.gmra.mxu0 %v625
        %v636 = vpop.f32.mrf.mxu0
        %v637 = vadd.f32 %v610, %v636
        %v638 = vpop.f32.mrf.mxu0
        %639 = vdwg.mxu0
        %v640 = vpack.c.bf16 %v637, %v637
        %vm641 = vcmask 257024
        %642 = vst.msk [vmem:[%s545] sm:$0xf] %vm641, %v640
        %v643 = vld [vmem:[#allocation10] sm:$0xf]
        %v644 = vld [vmem:[#allocation10 + $0x4] sm:$0xf]
        %v645 = vld [vmem:[#allocation10 + $0x8] sm:$0xf]
        %v646 = vld [vmem:[#allocation10 + $0xc] sm:$0xf]
        %v647 = vld [vmem:[%s6] sm:$0x1]
        %v649 = vperm.slane %v647, 0
        %v655 = vunpack.c.l.b16 %v643
        %v656 = vunpack.c.l.b16 %v644
        %v657 = vunpack.c.l.b16 %v645
        %v658 = vunpack.c.l.b16 %v646
        %v659 = vpack.c.b16 %v656, %v655
        %v660 = vpack.c.b16 %v658, %v657
        %663 = vmatpush.bf16.msra.mxu0 0
        %664 = vmatpush.bf16.msra.mxu0 0
        %665 = vmatpush.bf16.msra.mxu0 0
        %666 = vmatpush.bf16.msra.mxu0 0
        %667 = vmatpush.bf16.msra.mxu0 0
        %668 = vmatpush.bf16.msra.mxu0 0
        %669 = vmatpush.bf16.msra.mxu0 %v660
        %670 = vmatpush.bf16.msra.mxu0 %v659
        %671 = vmatmul.bf16.gmra.mxu0 %v625
        %v672 = vpop.f32.mrf.mxu0
        %v673 = vadd.f32 %v649, %v672
        %v674 = vpop.f32.mrf.mxu0
        %675 = vdwg.mxu0
        %v676 = vpack.c.bf16 %v673, %v673
        %677 = vst.msk [vmem:[%s552] sm:$0xf] %vm641, %v676
        %v678 = vld [vmem:[#allocation11] sm:$0xf]
        %v679 = vld [vmem:[#allocation11 + $0x4] sm:$0xf]
        %v680 = vld [vmem:[#allocation11 + $0x8] sm:$0xf]
        %v681 = vld [vmem:[#allocation11 + $0xc] sm:$0xf]
        %v682 = vld [vmem:[%s8] sm:$0x1]
        %v684 = vperm.slane %v682, 0
        %v690 = vunpack.c.l.b16 %v678
        %v691 = vunpack.c.l.b16 %v679
        %v692 = vunpack.c.l.b16 %v680
        %v693 = vunpack.c.l.b16 %v681
        %v694 = vpack.c.b16 %v691, %v690
        %v695 = vpack.c.b16 %v693, %v692
        %698 = vmatpush.bf16.msra.mxu0 0
        %699 = vmatpush.bf16.msra.mxu0 0
        %700 = vmatpush.bf16.msra.mxu0 0
        %701 = vmatpush.bf16.msra.mxu0 0
        %702 = vmatpush.bf16.msra.mxu0 0
        %703 = vmatpush.bf16.msra.mxu0 0
        %704 = vmatpush.bf16.msra.mxu0 %v695
        %705 = vmatpush.bf16.msra.mxu0 %v694
        %706 = vmatmul.bf16.gmra.mxu0 %v625
        %v707 = vpop.f32.mrf.mxu0
        %v708 = vadd.f32 %v684, %v707
        %v709 = vpop.f32.mrf.mxu0
        %710 = vdwg.mxu0
        %v711 = vpack.c.bf16 %v708, %v708
        %712 = vst.msk [vmem:[%s559] sm:$0xf] %vm641, %v711
        %s713 = sand.u32 %s265, 1
        %s714 = scalar_lea.sflag [#allocation4], %s713
        %s715 = sand.u32 %s265, 1
        %s716 = smul.addr %s715, 4
        %s717 = scalar_lea.vmem [#allocation13], %s716
        %s718 = sand.u32 %s37, 1
        %s719 = scalar_lea.sflag [#allocation15], %s718
        %s720 = sand.u32 %s293, 1
        %s721 = smul.addr %s720, 4
        %s722 = scalar_lea.vmem [#allocation14], %s721
        %s723 = sand.u32 %s37, 1
        %s724 = scalar_lea.sflag [#allocation15], %s723
        %s725 = sand.u32 %s321, 1
        %s726 = smul.addr %s725, 4
        %s727 = scalar_lea.vmem [#allocation16], %s726
        // Predicated region
        $region81: #{tpu_custom_call.1} parent=55 // pred_check
          %p728 = pneg %p275
        $region82: #{tpu_custom_call.1} parent=55 // pred_check_branch
          %730 = sbr.rel (%p728) target = $region84
        $region83: #{tpu_custom_call.1} parent=55 // pred_region
          %732 = vsyncadd %s714, 0
          %s733 = sadd.s32 %s42, %s41
          %s734 = smul.addr %s733, 4
          %s735 = scalar_lea.hbm %s9, %s734
          %s737 = sshll.u32 %s717, 4
          %s738 = int_to_ptr.vmem [resolvable:$true] %s737
          %s739 = sshll.u32 %s735, 4
          %s740 = int_to_ptr.hbm [resolvable:$true] %s739
          %742 = dma.vmem_to_hbm [thread:$0]  %s738, 64, %s740, %s714
        $region84: #{tpu_custom_call.1} parent=55 // pred_fallthru
          _
        // Predicated region
        $region85: #{tpu_custom_call.1} parent=55 // pred_check
          %p743 = pneg %p303
        $region86: #{tpu_custom_call.1} parent=55 // pred_check_branch
          %745 = sbr.rel (%p743) target = $region88
        $region87: #{tpu_custom_call.1} parent=55 // pred_region
          %747 = vsyncadd %s719, 0
          %s748 = sadd.s32 %s42, %s41
          %s749 = smul.addr %s748, 4
          %s750 = scalar_lea.hbm %s10, %s749
          %s752 = sshll.u32 %s722, 4
          %s753 = int_to_ptr.vmem [resolvable:$true] %s752
          %s754 = sshll.u32 %s750, 4
          %s755 = int_to_ptr.hbm [resolvable:$true] %s754
          %757 = dma.vmem_to_hbm [thread:$0]  %s753, 64, %s755, %s719
        $region88: #{tpu_custom_call.1} parent=55 // pred_fallthru
          _
        // Predicated region
        $region89: #{tpu_custom_call.1} parent=55 // pred_check
          %p758 = pneg %p331
        $region90: #{tpu_custom_call.1} parent=55 // pred_check_branch
          %760 = sbr.rel (%p758) target = $region92
        $region91: #{tpu_custom_call.1} parent=55 // pred_region
          %762 = vsyncadd %s724, 0
          %s763 = sadd.s32 %s42, %s41
          %s764 = smul.addr %s763, 4
          %s765 = scalar_lea.hbm %s11, %s764
          %s767 = sshll.u32 %s727, 4
          %s768 = int_to_ptr.vmem [resolvable:$true] %s767
          %s769 = sshll.u32 %s765, 4
          %s770 = int_to_ptr.hbm [resolvable:$true] %s769
          %772 = dma.vmem_to_hbm [thread:$0]  %s768, 64, %s770, %s724
        $region92: #{tpu_custom_call.1} parent=55 // pred_fallthru
          _
      $region56: #{tpu_custom_call.1} parent=5 // pred_fallthru
        _
      %p773 = scmp.le.s32.totalorder 2, %s32
      // Predicated region
      $region93: #{tpu_custom_call.1} parent=5 // pred_check
        %p774 = pneg %p773
      $region94: #{tpu_custom_call.1} parent=5 // pred_check_branch
        %776 = sbr.rel (%p774) target = $region96
      $region95: #{tpu_custom_call.1} parent=5 // pred_region
        %s777 = ssub.s32 %s32, 2
        // Predicated region
        $region97: #{tpu_custom_call.1} parent=95 // pred_check
          %p778 = pneg %p281
        $region98: #{tpu_custom_call.1} parent=95 // pred_check_branch
          %780 = sbr.rel (%p778) target = $region100
        $region99: #{tpu_custom_call.1} parent=95 // pred_region
          %s781 = sand.u32 %s266, 1
          %s782 = scalar_lea.sflag [#allocation4], %s781
          %s783 = sand.u32 %s266, 1
          %s784 = smul.addr %s783, 4
          %s785 = scalar_lea.vmem [#allocation13], %s784
          %787 = dma.done %s782, 64
        $region100: #{tpu_custom_call.1} parent=95 // pred_fallthru
          _
        // Predicated region
        $region101: #{tpu_custom_call.1} parent=95 // pred_check
          %p788 = pneg %p309
        $region102: #{tpu_custom_call.1} parent=95 // pred_check_branch
          %790 = sbr.rel (%p788) target = $region104
        $region103: #{tpu_custom_call.1} parent=95 // pred_region
          %s791 = sand.u32 %s38, 1
          %s792 = scalar_lea.sflag [#allocation15], %s791
          %s793 = sand.u32 %s294, 1
          %s794 = smul.addr %s793, 4
          %s795 = scalar_lea.vmem [#allocation14], %s794
          %797 = dma.done %s792, 64
        $region104: #{tpu_custom_call.1} parent=95 // pred_fallthru
          _
        // Predicated region
        $region105: #{tpu_custom_call.1} parent=95 // pred_check
          %p798 = pneg %p337
        $region106: #{tpu_custom_call.1} parent=95 // pred_check_branch
          %800 = sbr.rel (%p798) target = $region108
        $region107: #{tpu_custom_call.1} parent=95 // pred_region
          %s801 = sand.u32 %s38, 1
          %s802 = scalar_lea.sflag [#allocation15], %s801
          %s803 = sand.u32 %s322, 1
          %s804 = smul.addr %s803, 4
          %s805 = scalar_lea.vmem [#allocation16], %s804
          %807 = dma.done %s802, 64
        $region108: #{tpu_custom_call.1} parent=95 // pred_fallthru
          _
      $region96: #{tpu_custom_call.1} parent=5 // pred_fallthru
        _
    $region6: #{tpu_custom_call.1} parent=1 // loop_footer
      %s36 = sadd.s32 1, %s32
    $region7: #{tpu_custom_call.1} parent=1 // loop_footer_branch
      %31 = sbr.rel target = $region3
    $region8: #{tpu_custom_call.1} parent=1 // loop_exit
      _
    %808 = vsyncpa [#allocation3], 1
    %s809 = scalar_lea.sflag [#allocation3], 1
    %810 = vsyncpa %s809, 1
    %811 = vsyncpa [#allocation6], 1
    %s812 = scalar_lea.sflag [#allocation6], 1
    %813 = vsyncpa %s812, 1
    %814 = vsyncpa [#allocation9], 1
    %815 = vsyncpa [#allocation12], 1
    %816 = vsyncpa [#allocation4], 1
    %s817 = scalar_lea.sflag [#allocation4], 1
    %818 = vsyncpa %s817, 1
    %819 = vsyncpa [#allocation15], 1
    %s820 = scalar_lea.sflag [#allocation15], 1
    %821 = vsyncpa %s820, 1

</llo_original>
